<compile_context>
chip_gen: v5e
topology: v5e:2x2
jax: 0.10.0
libtpu: 0.0.40
codegen_flags: <defaults>
</compile_context>

<pallas_src>
import jax
import jax.numpy as jnp
from jax import lax
from jax.experimental import pallas as pl
from jax.experimental.pallas import tpu as pltpu


def _mlp_kernel(x_ref, w_ref, b_ref, o_ref):
    # x_ref: (1, C, tn)  channels-first spatial tile (NCHW native layout)
    # w_ref: (C, E)      weight transposed to (in, out), VMEM-resident
    # b_ref: (1, E)
    # o_ref: (1, tn, E)
    x = x_ref[0]                                   # (C, tn)
    # Contract the channel axis of the NCHW tile directly: out[t, e] = sum_c x[c, t] * W^T[c, e]
    acc = lax.dot_general(
        x, w_ref[...],
        dimension_numbers=(((0,), (0,)), ((), ())),
        preferred_element_type=jnp.float32,
    )                                              # (tn, E), f32 accumulation
    o_ref[0] = (acc + b_ref[...]).astype(o_ref.dtype)


def mlp_forward(x_nchw, weight, bias, *, tile_hw=None,
                vmem_limit_bytes=32 * 1024 * 1024):
    """x_nchw: (B, C, H, W); weight: (E, C) [PyTorch Linear layout]; bias: (E,).

    Returns (B, H*W, E), matching `x.flatten(2).transpose(1, 2) @ W.T + b`.
    """
    B, C, H, W = x_nchw.shape
    E = weight.shape[0]
    HW = H * W
    itemsize = jnp.dtype(x_nchw.dtype).itemsize

    # ---- pick the spatial tile size against the VMEM budget ---------------
    if tile_hw is None:
        resident = 2 * (C * E + E) * itemsize              # weight + bias buffers
        per_row = 2 * (C + E) * itemsize                   # double-buffered in + out per spatial pos
        budget = int(0.75 * vmem_limit_bytes) - resident   # leave headroom
        tile_hw = budget // per_row if budget > 0 else 128
        tile_hw = min(4096, tile_hw)
    tile_hw = max(128, (int(tile_hw) // 128) * 128)        # multiple of 128 lanes
    tile_hw = min(tile_hw, pl.cdiv(HW, 128) * 128)         # no bigger than padded HW

    # ---- free NCHW view + (only if needed) pad the spatial axis -----------
    x3d = x_nchw.reshape(B, C, HW)                         # free row-major view, no transpose
    n_tiles = pl.cdiv(HW, tile_hw)
    HW_pad = n_tiles * tile_hw
    if HW_pad != HW:
        x3d = jnp.pad(x3d, ((0, 0), (0, 0), (0, HW_pad - HW)))

    w_t = weight.T                                         # (C, E): tiny one-off transpose
    b2d = bias.reshape(1, E)

    out = pl.pallas_call(
        _mlp_kernel,
        out_shape=jax.ShapeDtypeStruct((B, HW_pad, E), x_nchw.dtype),
        grid_spec=pltpu.PrefetchScalarGridSpec(
            num_scalar_prefetch=0,
            grid=(B, n_tiles),
            in_specs=[
                pl.BlockSpec((1, C, tile_hw), lambda b, j: (b, 0, j)),  # NCHW spatial tile
                pl.BlockSpec((C, E), lambda b, j: (0, 0)),              # weight: resident
                pl.BlockSpec((1, E), lambda b, j: (0, 0)),              # bias: resident
            ],
            out_specs=pl.BlockSpec((1, tile_hw, E), lambda b, j: (b, j, 0)),
        ),
        compiler_params=pltpu.CompilerParams(
            dimension_semantics=("parallel", "parallel"),
            vmem_limit_bytes=vmem_limit_bytes,
        ),
    )(x3d, w_t, b2d)

    if HW_pad != HW:
        out = out[:, :HW, :]
    return out                                             # (B, H*W, E)


if __name__ == "__main__":
    # Small shapes consistent with the module (input_dim=C, embed_dim=E).
    # E=128 keeps the output lane-dense, like the module's realistic 256/768 dims.
    B, C, H, W = 2, 32, 16, 16
    E = 128

    key = jax.random.PRNGKey(0)
    kx, kw, kb = jax.random.split(key, 3)

    x = jax.random.normal(kx, (B, C, H, W), dtype=jnp.float32)
    weight = jax.random.normal(kw, (E, C), dtype=jnp.float32) * (1.0 / jnp.sqrt(C))
    bias = jax.random.normal(kb, (E,), dtype=jnp.float32) * 0.01

    out = mlp_forward(x, weight, bias)
    jax.block_until_ready(out)

    ref = jnp.transpose(x.reshape(B, C, H * W), (0, 2, 1)) @ weight.T + bias
    assert out.shape == (B, H * W, E)
    assert jnp.allclose(out, ref, atol=1e-4, rtol=1e-4)

    # Ragged spatial size (H*W = 63, not a multiple of 128): exercises the
    # pl.cdiv grid + pad-and-slice tail path instead of the old hard assert.
    H2, W2 = 9, 7
    x2 = jax.random.normal(kx, (B, C, H2, W2), dtype=jnp.float32)
    out2 = mlp_forward(x2, weight, bias)
    jax.block_until_ready(out2)
    ref2 = jnp.transpose(x2.reshape(B, C, H2 * W2), (0, 2, 1)) @ weight.T + bias
    assert out2.shape == (B, H2 * W2, E)
    assert jnp.allclose(out2, ref2, atol=1e-4, rtol=1e-4)

    print("KERNEL_OK")
</pallas_src>

<mosaic_0001>
module attributes {stable_mosaic.version = 11 : i64} {
  func.func @_mlp_kernel(%arg0: i32, %arg1: i32, %arg2: memref<1x32x256xf32, #tpu.memory_space<vmem>>, %arg3: memref<32x128xf32, #tpu.memory_space<vmem>>, %arg4: memref<1x128xf32, #tpu.memory_space<vmem>>, %arg5: memref<1x256x128xf32, #tpu.memory_space<vmem>>) attributes {dimension_semantics = [#tpu.dimension_semantics<parallel>, #tpu.dimension_semantics<parallel>], iteration_bounds = array<i64: 2, 1>, scalar_prefetch = 0 : i64, scratch_operands = 0 : i64, tpu.core_type = #tpu.core_type<tc>, window_params = [{transform_indices = @transform_0, window_bounds = array<i64: 1, 32, 256>}, {pipeline_mode = #tpu.pipeline_mode<synchronous>, transform_indices = @transform_1, window_bounds = array<i64: 32, 128>}, {pipeline_mode = #tpu.pipeline_mode<synchronous>, transform_indices = @transform_2, window_bounds = array<i64: 1, 128>}, {transform_indices = @transform_3, window_bounds = array<i64: 1, 256, 128>}]} {
    %c0 = arith.constant 0 : index
    %c0_0 = arith.constant 0 : index
    %c0_1 = arith.constant 0 : index
    %0 = vector.load %arg2[%c0, %c0_0, %c0_1] : memref<1x32x256xf32, #tpu.memory_space<vmem>>, vector<1x32x256xf32>
    %1 = vector.shape_cast %0 : vector<1x32x256xf32> to vector<32x256xf32>
    %c0_2 = arith.constant 0 : index
    %c0_3 = arith.constant 0 : index
    %2 = vector.load %arg3[%c0_2, %c0_3] : memref<32x128xf32, #tpu.memory_space<vmem>>, vector<32x128xf32>
    %cst = arith.constant dense<0.000000e+00> : vector<256x128xf32>
    %3 = tpu.matmul %1, %2, %cst {dimension_numbers = #tpu.dot_dimension_numbers<[0], [0], [1], [1], [0, 1, 1, 1], [], []>} : vector<32x256xf32>, vector<32x128xf32>, vector<256x128xf32> -> vector<256x128xf32>
    %c0_4 = arith.constant 0 : index
    %c0_5 = arith.constant 0 : index
    %4 = vector.load %arg4[%c0_4, %c0_5] : memref<1x128xf32, #tpu.memory_space<vmem>>, vector<1x128xf32>
    %5 = vector.broadcast %4 : vector<1x128xf32> to vector<256x128xf32>
    %6 = arith.addf %3, %5 : vector<256x128xf32>
    %c0_6 = arith.constant 0 : index
    %c0_7 = arith.constant 0 : index
    %c0_8 = arith.constant 0 : index
    %7 = vector.load %arg5[%c0_6, %c0_7, %c0_8] : memref<1x256x128xf32, #tpu.memory_space<vmem>>, vector<1x256x128xf32>
    %8 = vector.shape_cast %7 : vector<1x256x128xf32> to vector<256x128xf32>
    %9 = vector.shape_cast %6 : vector<256x128xf32> to vector<1x256x128xf32>
    tpu.vector_store %arg5[%c0_6, %c0_7, %c0_8], %9 {strides = array<i32>} : memref<1x256x128xf32, #tpu.memory_space<vmem>>, vector<1x256x128xf32>,
    return
  }
  func.func @transform_0(%arg0: i32, %arg1: i32) -> (i32, i32, i32) {
    %c0_i32 = arith.constant 0 : i32
    %c0_i32_0 = arith.constant 0 : i32
    return %arg0, %c0_i32, %arg1 : i32, i32, i32
  }
  func.func @transform_1(%arg0: i32, %arg1: i32) -> (i32, i32) {
    %c0_i32 = arith.constant 0 : i32
    %c0_i32_0 = arith.constant 0 : i32
    %c0_i32_1 = arith.constant 0 : i32
    return %c0_i32, %c0_i32_0 : i32, i32
  }
  func.func @transform_2(%arg0: i32, %arg1: i32) -> (i32, i32) {
    %c0_i32 = arith.constant 0 : i32
    %c0_i32_0 = arith.constant 0 : i32
    %c0_i32_1 = arith.constant 0 : i32
    return %c0_i32, %c0_i32_0 : i32, i32
  }
  func.func @transform_3(%arg0: i32, %arg1: i32) -> (i32, i32, i32) {
    %c0_i32 = arith.constant 0 : i32
    %c0_i32_0 = arith.constant 0 : i32
    return %arg0, %arg1, %c0_i32 : i32, i32, i32
  }
}

</mosaic_0001>

<llo_original>
// kernel: tpu_custom_call.1
$region0: #{tpu_custom_call.1}
  #allocation0 [shape = 'u32[]', space=smem, size = 0x4, offset = 0x4, fixed_abs, tag = 'smem constant byte address 0x4 - core index']
  #allocation1 [shape = 'u32[72,128]{1,0:T(1,128)}', space=vmem, size = 0x9000, scoped, tag = 'internal scratch']
  %s0 = inlined_call_operand.hbm [shape: f32[2,32,256], index: 0, kind: input, shape index: {}]
  %s1 = inlined_call_operand.hbm [shape: f32[32,128], index: 1, kind: input, shape index: {}]
  %s2 = inlined_call_operand.vmem [shape: f32[1,128], index: 2, kind: input, shape index: {}]
  %s3 = inlined_call_operand.hbm [shape: f32[2,256,128], index: 3, kind: output, shape index: {}]
  %s4 = sld [smem:[#allocation0]]
  $region53: #{tpu_custom_call.1} parent=0
    _
  %s6 = ssub.s32 1, %s4
  %s7 = scalar_select 0, %s6, %s4
  $region1: #{tpu_custom_call.1} parent=0
    #allocation2 [shape = 'u8[65536]{0}', space=vmem, size = 0x10000, scoped, tag = 'input window, operand 0']
    #allocation3 [shape = 's32[2]{0}', space=sflag, size = 0x8, scoped, tag = 'scoped memory for tpu_custom_call.1']
    #allocation4 [shape = 's32[2]{0}', space=sflag, size = 0x8, scoped, tag = 'scoped memory for tpu_custom_call.1']
    #allocation5 [shape = 'u8[16384]{0}', space=vmem, size = 0x4000, scoped, tag = 'input window, operand 1, single buffered']
    #allocation6 [shape = 's32[1]{0}', space=sflag, size = 0x4, scoped, tag = 'scoped memory for tpu_custom_call.1']
    #allocation7 [shape = 'u8[262144]{0}', space=vmem, size = 0x40000, scoped, tag = 'output window, operand 0']
    %8 = vsyncpa [#allocation3], 0
    %s9 = scalar_lea.sflag [#allocation3], 1
    %10 = vsyncpa %s9, 0
    %11 = vsyncpa [#allocation6], 0
    %12 = vsyncpa [#allocation4], 0
    %s13 = scalar_lea.sflag [#allocation4], 1
    %14 = vsyncpa %s13, 0
    loop: start=0, step=1, limit=4
    $region2: #{tpu_custom_call.1} parent=1 // loop_pre_header
      _
    $region3: #{tpu_custom_call.1} parent=1 // loop_header
      %s16 = sphi 0, %s20
      %p17 = scmp.ge.s32.totalorder %s16, 4
      %s23 = sphi 0, %s35
      %s24 = sphi 0, %s31
      %s25 = sphi 0, %s23
      %s26 = sphi 0, %s24
      %s27 = sphi 0, %s25
      %s28 = sphi 0, %s26
      %s40 = sphi 0, %s42
      %s43 = sphi 0, %s40
      %s44 = sphi 0, %s43
      %s60 = sphi 0, %s44
      %s64 = sphi 0, %s64
      %s66 = sphi 0, %s64
      %s67 = sphi 0, %s66
      %s81 = sphi 0, %s67
      %s85 = sphi 0, %s85
      %s87 = sphi 0, %s85
      %s88 = sphi 0, %s87
      %s102 = sphi 0, %s88
      %s110 = sphi 0, %s112
      %s113 = sphi 0, %s110
      %s114 = sphi 0, %s113
      %s130 = sphi 0, %s114
    $region4: #{tpu_custom_call.1} parent=1 // loop_header_branch
      %19 = sbr.rel (%p17) target = $region8
    $region5: #{tpu_custom_call.1} parent=1 // loop_body
      %s21 = ssub.s32 %s16, 1
      %s22 = ssub.s32 %s16, 2
      %s29 = sadd.s32 1, %s24
      %p30 = scmp.ge.s32.totalorder %s29, 1
      %s31 = scalar_select %p30, 0, %s29
      %s32 = sadd.s32 1, %s23
      %s33 = scalar_select %p30, %s32, %s23
      %p34 = scmp.ge.s32.totalorder %s33, 2
      %s35 = scalar_select %p34, 0, %s33
      %s36 = ssub.s32 %s23, %s35
      %s37 = ssub.s32 %s24, %s31
      %s38 = sor.u32 %s36, %s37
      %p39 = scmp.eq.s32.totalorder %s38, 0
      %s41 = sadd.s32 %s40, 1
      %s42 = scalar_select %p39, %s40, %s41
      %p45 = pneg %p39
      %p46 = scmp.eq.s32.totalorder %s16, 1
      %p47 = por %p45, %p46
      %p48 = scmp.ne.s32.totalorder %s40, %s43
      %p49 = scmp.eq.s32.totalorder %s16, 0
      %p50 = por %p48, %p49
      %p51 = scmp.ne.s32.totalorder %s40, %s43
      %p52 = scmp.eq.s32.totalorder %s21, 1
      %p53 = por %p51, %p52
      %p54 = scmp.ne.s32.totalorder %s43, %s44
      %p55 = scmp.eq.s32.totalorder %s21, 0
      %p56 = por %p54, %p55
      %p57 = scmp.ne.s32.totalorder %s43, %s44
      %p58 = scmp.eq.s32.totalorder %s22, 1
      %p59 = por %p57, %p58
      %p61 = scmp.ne.s32.totalorder %s44, %s60
      %p62 = scmp.eq.s32.totalorder %s22, 0
      %p63 = por %p61, %p62
      %s65 = sadd.s32 %s64, 1
      %p68 = scmp.eq.s32.totalorder %s16, 1
      %p69 = scmp.ne.s32.totalorder %s64, %s66
      %p70 = scmp.eq.s32.totalorder %s16, 0
      %p71 = por %p69, %p70
      %p72 = scmp.ne.s32.totalorder %s64, %s66
      %p73 = scmp.eq.s32.totalorder %s21, 1
      %p74 = por %p72, %p73
      %p75 = scmp.ne.s32.totalorder %s66, %s67
      %p76 = scmp.eq.s32.totalorder %s21, 0
      %p77 = por %p75, %p76
      %p78 = scmp.ne.s32.totalorder %s66, %s67
      %p79 = scmp.eq.s32.totalorder %s22, 1
      %p80 = por %p78, %p79
      %p82 = scmp.ne.s32.totalorder %s67, %s81
      %p83 = scmp.eq.s32.totalorder %s22, 0
      %p84 = por %p82, %p83
      %s86 = sadd.s32 %s85, 1
      %p89 = scmp.eq.s32.totalorder %s16, 1
      %p90 = scmp.ne.s32.totalorder %s85, %s87
      %p91 = scmp.eq.s32.totalorder %s16, 0
      %p92 = por %p90, %p91
      %p93 = scmp.ne.s32.totalorder %s85, %s87
      %p94 = scmp.eq.s32.totalorder %s21, 1
      %p95 = por %p93, %p94
      %p96 = scmp.ne.s32.totalorder %s87, %s88
      %p97 = scmp.eq.s32.totalorder %s21, 0
      %p98 = por %p96, %p97
      %p99 = scmp.ne.s32.totalorder %s87, %s88
      %p100 = scmp.eq.s32.totalorder %s22, 1
      %p101 = por %p99, %p100
      %p103 = scmp.ne.s32.totalorder %s88, %s102
      %p104 = scmp.eq.s32.totalorder %s22, 0
      %p105 = por %p103, %p104
      %s106 = ssub.s32 %s23, %s35
      %s107 = ssub.s32 %s24, %s31
      %s108 = sor.u32 %s106, %s107
      %p109 = scmp.eq.s32.totalorder %s108, 0
      %s111 = sadd.s32 %s110, 1
      %s112 = scalar_select %p109, %s110, %s111
      %p115 = pneg %p109
      %p116 = scmp.eq.s32.totalorder %s16, 1
      %p117 = por %p115, %p116
      %p118 = scmp.ne.s32.totalorder %s110, %s113
      %p119 = scmp.eq.s32.totalorder %s16, 0
      %p120 = por %p118, %p119
      %p121 = scmp.ne.s32.totalorder %s110, %s113
      %p122 = scmp.eq.s32.totalorder %s21, 1
      %p123 = por %p121, %p122
      %p124 = scmp.ne.s32.totalorder %s113, %s114
      %p125 = scmp.eq.s32.totalorder %s21, 0
      %p126 = por %p124, %p125
      %p127 = scmp.ne.s32.totalorder %s113, %s114
      %p128 = scmp.eq.s32.totalorder %s22, 1
      %p129 = por %p127, %p128
      %p131 = scmp.ne.s32.totalorder %s114, %s130
      %p132 = scmp.eq.s32.totalorder %s22, 0
      %p133 = por %p131, %p132
      %p134 = scmp.le.s32.totalorder 1, %s16
      %p135 = scmp.lt.s32.totalorder %s16, 3
      %p136 = pnand %p134, %p135
      %p137 = pneg %p136
      // Predicated region
      $region9: #{tpu_custom_call.1} parent=5 // pred_check
        _
      $region10: #{tpu_custom_call.1} parent=5 // pred_check_branch
        %139 = sbr.rel (%p136) target = $region12
      $region11: #{tpu_custom_call.1} parent=5 // pred_region
        %s140 = ssub.s32 %s16, 1
        // Predicated region
        $region13: #{tpu_custom_call.1} parent=11 // pred_check
          %p141 = pneg %p77
        $region14: #{tpu_custom_call.1} parent=11 // pred_check_branch
          %143 = sbr.rel (%p141) target = $region16
        $region15: #{tpu_custom_call.1} parent=11 // pred_region
          %145 = vsyncadd [#allocation6], 0
          %s146 = sshll.u32 %s1, 4
          %s147 = int_to_ptr.hbm [resolvable:$true] %s146
          %s148 = sshll.u32 [#allocation5], 4
          %s149 = int_to_ptr.vmem [resolvable:$true] %s148
          %154 = dma.hbm_to_vmem [thread:$0]  %s147, 512, %s149, [#allocation6], 128, 128, 8
        $region16: #{tpu_custom_call.1} parent=11 // pred_fallthru
          _
        // Predicated region
        $region17: #{tpu_custom_call.1} parent=11 // pred_check
          %p155 = pneg %p98
        $region18: #{tpu_custom_call.1} parent=11 // pred_check_branch
          %157 = sbr.rel (%p155) target = $region20
        $region19: #{tpu_custom_call.1} parent=11 // pred_region
          _
        $region20: #{tpu_custom_call.1} parent=11 // pred_fallthru
          _
      $region12: #{tpu_custom_call.1} parent=5 // pred_fallthru
        _
      %p158 = scmp.lt.s32.totalorder %s16, 2
      // Predicated region
      $region21: #{tpu_custom_call.1} parent=5 // pred_check
        %p159 = pneg %p158
      $region22: #{tpu_custom_call.1} parent=5 // pred_check_branch
        %161 = sbr.rel (%p159) target = $region24
      $region23: #{tpu_custom_call.1} parent=5 // pred_region
        // Predicated region
        $region25: #{tpu_custom_call.1} parent=23 // pred_check
          %p162 = pneg %p50
        $region26: #{tpu_custom_call.1} parent=23 // pred_check_branch
          %164 = sbr.rel (%p162) target = $region28
        $region27: #{tpu_custom_call.1} parent=23 // pred_region
          %s165 = sand.u32 %s40, 1
          %s166 = scalar_lea.sflag [#allocation3], %s165
          %s167 = sand.u32 %s40, 1
          %s168 = smul.addr %s167, 64
          %s169 = scalar_lea.vmem [#allocation2], %s168
          %s170 = smul.u32 2, %s24
          %172 = vsyncadd %s166, 0
          %s173 = smul.addr %s23, 8
          %s174 = sadd.s32 %s170, %s173
          %s175 = smul.addr %s174, 8
          %s176 = scalar_lea.hbm %s0, %s175
          %s177 = sshll.u32 %s176, 4
          %s178 = int_to_ptr.hbm [resolvable:$true] %s177
          %s179 = sshll.u32 %s169, 4
          %s180 = int_to_ptr.vmem [resolvable:$true] %s179
          %185 = dma.hbm_to_vmem [thread:$0]  %s178, 1024, %s180, %s166, 256, 256, 16
        $region28: #{tpu_custom_call.1} parent=23 // pred_fallthru
          _
      $region24: #{tpu_custom_call.1} parent=5 // pred_fallthru
        _
      %p186 = scmp.le.s32.totalorder 1, %s16
      %p187 = scmp.lt.s32.totalorder %s16, 3
      %p188 = pnand %p186, %p187
      %p189 = pneg %p188
      // Predicated region
      $region29: #{tpu_custom_call.1} parent=5 // pred_check
        _
      $region30: #{tpu_custom_call.1} parent=5 // pred_check_branch
        %191 = sbr.rel (%p188) target = $region32
      $region31: #{tpu_custom_call.1} parent=5 // pred_region
        %s192 = ssub.s32 %s16, 1
        %s193 = sand.u32 %s43, 1
        %s194 = scalar_lea.sflag [#allocation3], %s193
        %s195 = sand.u32 %s43, 1
        %s196 = smul.addr %s195, 64
        %s197 = scalar_lea.vmem [#allocation2], %s196
        // Predicated region
        $region33: #{tpu_custom_call.1} parent=31 // pred_check
          %p198 = pneg %p56
        $region34: #{tpu_custom_call.1} parent=31 // pred_check_branch
          %200 = sbr.rel (%p198) target = $region36
        $region35: #{tpu_custom_call.1} parent=31 // pred_region
          %202 = dma.done %s194, 1024
        $region36: #{tpu_custom_call.1} parent=31 // pred_fallthru
          _
        // Predicated region
        $region37: #{tpu_custom_call.1} parent=31 // pred_check
          %p203 = pneg %p77
        $region38: #{tpu_custom_call.1} parent=31 // pred_check_branch
          %205 = sbr.rel (%p203) target = $region40
        $region39: #{tpu_custom_call.1} parent=31 // pred_region
          %207 = dma.done [#allocation6], 512
        $region40: #{tpu_custom_call.1} parent=31 // pred_fallthru
          _
        %s208 = sand.u32 %s43, 1
        %s209 = scalar_lea.sflag [#allocation3], %s208
        %s210 = sand.u32 %s43, 1
        %s211 = smul.addr %s210, 64
        %s212 = scalar_lea.vmem [#allocation2], %s211
        %p213 = pneg %p56
        %p214 = pneg %p53
        %p215 = pneg %p77
        %p216 = pneg %p74
        %p217 = pneg %p98
        %p218 = pneg %p95
        %p219 = pneg %p126
        %p220 = pneg %p123
        %s221 = sand.u32 %s113, 1
        %s222 = scalar_lea.sflag [#allocation4], %s221
        %s223 = sand.u32 %s113, 1
        %s224 = smul.addr %s223, 256
        %s225 = scalar_lea.vmem [#allocation7], %s224
        %s226 = smul.u32 2, %s26
        %s227 = smul.u32 32, %s26
        %v228 = vld [vmem:[%s197] sm:$0xff]
        %v229 = vld [vmem:[%s197 + $0x8] sm:$0xff]
        %v230 = vld [vmem:[%s197 + $0x10] sm:$0xff]
        %v231 = vld [vmem:[%s197 + $0x18] sm:$0xff]
        %v232 = vld [vmem:[%s197 + $0x20] sm:$0xff]
        %v233 = vld [vmem:[%s197 + $0x28] sm:$0xff]
        %v234 = vld [vmem:[%s197 + $0x30] sm:$0xff]
        %v235 = vld [vmem:[%s197 + $0x38] sm:$0xff]
        %v236 = vld [vmem:[#allocation5] sm:$0xff]
        %v237 = vld [vmem:[#allocation5 + $0x8] sm:$0xff]
        %v238 = vld [vmem:[#allocation5 + $0x10] sm:$0xff]
        %v239 = vld [vmem:[#allocation5 + $0x18] sm:$0xff]
        %v240 = vld [vmem:[%s2] sm:$0x1]
        %v242 = vperm.slane %v240, 0
        %244 = vxpose.xlu0.b32.start [1/16] %v228, 128
        %245 = vxpose.xlu0.b32.cont [2/16] %v230, 128
        %246 = vxpose.xlu0.b32.cont [3/16] %v232, 128
        %247 = vxpose.xlu0.b32.cont [4/16] %v234, 128
        %248 = vxpose.xlu0.b32.cont [5/16] 0.0, 128
        %249 = vxpose.xlu0.b32.cont [6/16] 0.0, 128
        %250 = vxpose.xlu0.b32.cont [7/16] 0.0, 128
        %251 = vxpose.xlu0.b32.cont [8/16] 0.0, 128
        %252 = vxpose.xlu0.b32.cont [9/16] 0.0, 128
        %253 = vxpose.xlu0.b32.cont [10/16] 0.0, 128
        %254 = vxpose.xlu0.b32.cont [11/16] 0.0, 128
        %255 = vxpose.xlu0.b32.cont [12/16] 0.0, 128
        %256 = vxpose.xlu0.b32.cont [13/16] 0.0, 128
        %257 = vxpose.xlu0.b32.cont [14/16] 0.0, 128
        %258 = vxpose.xlu0.b32.cont [15/16] 0.0, 128
        %259 = vxpose.xlu0.b32.end [16/16] 0.0, 128
        %v260 = vpop.trf.xlu0
        %v261 = vpop.trf.xlu0
        %v262 = vpop.trf.xlu0
        %v263 = vpop.trf.xlu0
        %v264 = vpop.trf.xlu0
        %v265 = vpop.trf.xlu0
        %v266 = vpop.trf.xlu0
        %v267 = vpop.trf.xlu0
        %v268 = vpop.trf.xlu0
        %v269 = vpop.trf.xlu0
        %v270 = vpop.trf.xlu0
        %v271 = vpop.trf.xlu0
        %v272 = vpop.trf.xlu0
        %v273 = vpop.trf.xlu0
        %v274 = vpop.trf.xlu0
        %v275 = vpop.trf.xlu0
        %276 = vxpose.xlu0.b32.start [1/16] %v229, 128
        %277 = vxpose.xlu0.b32.cont [2/16] %v231, 128
        %278 = vxpose.xlu0.b32.cont [3/16] %v233, 128
        %279 = vxpose.xlu0.b32.cont [4/16] %v235, 128
        %280 = vxpose.xlu0.b32.cont [5/16] 0.0, 128
        %281 = vxpose.xlu0.b32.cont [6/16] 0.0, 128
        %282 = vxpose.xlu0.b32.cont [7/16] 0.0, 128
        %283 = vxpose.xlu0.b32.cont [8/16] 0.0, 128
        %284 = vxpose.xlu0.b32.cont [9/16] 0.0, 128
        %285 = vxpose.xlu0.b32.cont [10/16] 0.0, 128
        %286 = vxpose.xlu0.b32.cont [11/16] 0.0, 128
        %287 = vxpose.xlu0.b32.cont [12/16] 0.0, 128
        %288 = vxpose.xlu0.b32.cont [13/16] 0.0, 128
        %289 = vxpose.xlu0.b32.cont [14/16] 0.0, 128
        %290 = vxpose.xlu0.b32.cont [15/16] 0.0, 128
        %291 = vxpose.xlu0.b32.end [16/16] 0.0, 128
        %v292 = vpop.trf.xlu0
        %v293 = vpop.trf.xlu0
        %v294 = vpop.trf.xlu0
        %v295 = vpop.trf.xlu0
        %v296 = vpop.trf.xlu0
        %v297 = vpop.trf.xlu0
        %v298 = vpop.trf.xlu0
        %v299 = vpop.trf.xlu0
        %v300 = vpop.trf.xlu0
        %v301 = vpop.trf.xlu0
        %v302 = vpop.trf.xlu0
        %v303 = vpop.trf.xlu0
        %v304 = vpop.trf.xlu0
        %v305 = vpop.trf.xlu0
        %v306 = vpop.trf.xlu0
        %v307 = vpop.trf.xlu0
        %vm308 = vcmask 261120
        %v310 = vsel %vm308, %v260, 0
        %v313 = vsel %vm308, %v261, 0
        %v316 = vsel %vm308, %v262, 0
        %v319 = vsel %vm308, %v263, 0
        %v322 = vsel %vm308, %v264, 0
        %v325 = vsel %vm308, %v265, 0
        %v328 = vsel %vm308, %v266, 0
        %v331 = vsel %vm308, %v267, 0
        %v334 = vsel %vm308, %v268, 0
        %v337 = vsel %vm308, %v269, 0
        %v340 = vsel %vm308, %v270, 0
        %v343 = vsel %vm308, %v271, 0
        %v346 = vsel %vm308, %v272, 0
        %v349 = vsel %vm308, %v273, 0
        %v352 = vsel %vm308, %v274, 0
        %v355 = vsel %vm308, %v275, 0
        %v358 = vsel %vm308, %v292, 0
        %v361 = vsel %vm308, %v293, 0
        %v364 = vsel %vm308, %v294, 0
        %v367 = vsel %vm308, %v295, 0
        %v370 = vsel %vm308, %v296, 0
        %v373 = vsel %vm308, %v297, 0
        %v376 = vsel %vm308, %v298, 0
        %v379 = vsel %vm308, %v299, 0
        %v382 = vsel %vm308, %v300, 0
        %v385 = vsel %vm308, %v301, 0
        %v388 = vsel %vm308, %v302, 0
        %v391 = vsel %vm308, %v303, 0
        %v394 = vsel %vm308, %v304, 0
        %v397 = vsel %vm308, %v305, 0
        %v400 = vsel %vm308, %v306, 0
        %v403 = vsel %vm308, %v307, 0
        %405 = vmatpush.msra.mxu0 0.0
        %406 = vmatpush.msra.mxu0 0.0
        %407 = vmatpush.msra.mxu0 0.0
        %408 = vmatpush.msra.mxu0 0.0
        %409 = vmatpush.msra.mxu0 0.0
        %410 = vmatpush.msra.mxu0 0.0
        %411 = vmatpush.msra.mxu0 0.0
        %412 = vmatpush.msra.mxu0 0.0
        %413 = vmatpush.msra.mxu0 0.0
        %414 = vmatpush.msra.mxu0 0.0
        %415 = vmatpush.msra.mxu0 0.0
        %416 = vmatpush.msra.mxu0 0.0
        %417 = vmatpush.msra.mxu0 %v239
        %418 = vmatpush.msra.mxu0 %v238
        %419 = vmatpush.msra.mxu0 %v237
        %420 = vmatpush.msra.mxu0 %v236
        %421 = vmatmul.f32.gmra.mxu0 %v310
        %v422 = vpop.f32.mrf.mxu0
        %v423 = vadd.f32 %v242, %v422
        %424 = vmatmul.f32.gmra.mxu0 %v313
        %v425 = vpop.f32.mrf.mxu0
        %v426 = vadd.f32 %v242, %v425
        %427 = vmatmul.f32.gmra.mxu0 %v316
        %v428 = vpop.f32.mrf.mxu0
        %v429 = vadd.f32 %v242, %v428
        %430 = vmatmul.f32.gmra.mxu0 %v319
        %v431 = vpop.f32.mrf.mxu0
        %v432 = vadd.f32 %v242, %v431
        %433 = vmatmul.f32.gmra.mxu0 %v322
        %v434 = vpop.f32.mrf.mxu0
        %v435 = vadd.f32 %v242, %v434
        %436 = vmatmul.f32.gmra.mxu0 %v325
        %v437 = vpop.f32.mrf.mxu0
        %v438 = vadd.f32 %v242, %v437
        %439 = vmatmul.f32.gmra.mxu0 %v328
        %v440 = vpop.f32.mrf.mxu0
        %v441 = vadd.f32 %v242, %v440
        %442 = vmatmul.f32.gmra.mxu0 %v331
        %v443 = vpop.f32.mrf.mxu0
        %v444 = vadd.f32 %v242, %v443
        %445 = vmatmul.f32.gmra.mxu0 %v334
        %v446 = vpop.f32.mrf.mxu0
        %v447 = vadd.f32 %v242, %v446
        %448 = vmatmul.f32.gmra.mxu0 %v337
        %v449 = vpop.f32.mrf.mxu0
        %v450 = vadd.f32 %v242, %v449
        %451 = vmatmul.f32.gmra.mxu0 %v340
        %v452 = vpop.f32.mrf.mxu0
        %v453 = vadd.f32 %v242, %v452
        %454 = vmatmul.f32.gmra.mxu0 %v343
        %v455 = vpop.f32.mrf.mxu0
        %v456 = vadd.f32 %v242, %v455
        %457 = vmatmul.f32.gmra.mxu0 %v346
        %v458 = vpop.f32.mrf.mxu0
        %v459 = vadd.f32 %v242, %v458
        %460 = vmatmul.f32.gmra.mxu0 %v349
        %v461 = vpop.f32.mrf.mxu0
        %v462 = vadd.f32 %v242, %v461
        %463 = vmatmul.f32.gmra.mxu0 %v352
        %v464 = vpop.f32.mrf.mxu0
        %v465 = vadd.f32 %v242, %v464
        %466 = vmatmul.f32.gmra.mxu0 %v355
        %v467 = vpop.f32.mrf.mxu0
        %v468 = vadd.f32 %v242, %v467
        %469 = vmatmul.f32.gmra.mxu0 %v358
        %v470 = vpop.f32.mrf.mxu0
        %v471 = vadd.f32 %v242, %v470
        %472 = vmatmul.f32.gmra.mxu0 %v361
        %v473 = vpop.f32.mrf.mxu0
        %v474 = vadd.f32 %v242, %v473
        %475 = vmatmul.f32.gmra.mxu0 %v364
        %v476 = vpop.f32.mrf.mxu0
        %v477 = vadd.f32 %v242, %v476
        %478 = vmatmul.f32.gmra.mxu0 %v367
        %v479 = vpop.f32.mrf.mxu0
        %v480 = vadd.f32 %v242, %v479
        %481 = vmatmul.f32.gmra.mxu0 %v370
        %v482 = vpop.f32.mrf.mxu0
        %v483 = vadd.f32 %v242, %v482
        %484 = vmatmul.f32.gmra.mxu0 %v373
        %v485 = vpop.f32.mrf.mxu0
        %v486 = vadd.f32 %v242, %v485
        %487 = vmatmul.f32.gmra.mxu0 %v376
        %v488 = vpop.f32.mrf.mxu0
        %v489 = vadd.f32 %v242, %v488
        %490 = vmatmul.f32.gmra.mxu0 %v379
        %v491 = vpop.f32.mrf.mxu0
        %v492 = vadd.f32 %v242, %v491
        %493 = vmatmul.f32.gmra.mxu0 %v382
        %v494 = vpop.f32.mrf.mxu0
        %v495 = vadd.f32 %v242, %v494
        %496 = vmatmul.f32.gmra.mxu0 %v385
        %v497 = vpop.f32.mrf.mxu0
        %v498 = vadd.f32 %v242, %v497
        %499 = vmatmul.f32.gmra.mxu0 %v388
        %v500 = vpop.f32.mrf.mxu0
        %v501 = vadd.f32 %v242, %v500
        %502 = vmatmul.f32.gmra.mxu0 %v391
        %v503 = vpop.f32.mrf.mxu0
        %v504 = vadd.f32 %v242, %v503
        %505 = vmatmul.f32.gmra.mxu0 %v394
        %v506 = vpop.f32.mrf.mxu0
        %v507 = vadd.f32 %v242, %v506
        %508 = vmatmul.f32.gmra.mxu0 %v397
        %v509 = vpop.f32.mrf.mxu0
        %v510 = vadd.f32 %v242, %v509
        %511 = vmatmul.f32.gmra.mxu0 %v400
        %v512 = vpop.f32.mrf.mxu0
        %v513 = vadd.f32 %v242, %v512
        %514 = vmatmul.f32.gmra.mxu0 %v403
        %v515 = vpop.f32.mrf.mxu0
        %v516 = vadd.f32 %v242, %v515
        %517 = vdwg.mxu0
        %518 = vst [vmem:[%s225] sm:$0xff] %v423
        %519 = vst [vmem:[%s225 + $0x8] sm:$0xff] %v426
        %520 = vst [vmem:[%s225 + $0x10] sm:$0xff] %v429
        %521 = vst [vmem:[%s225 + $0x18] sm:$0xff] %v432
        %522 = vst [vmem:[%s225 + $0x20] sm:$0xff] %v435
        %523 = vst [vmem:[%s225 + $0x28] sm:$0xff] %v438
        %524 = vst [vmem:[%s225 + $0x30] sm:$0xff] %v441
        %525 = vst [vmem:[%s225 + $0x38] sm:$0xff] %v444
        %526 = vst [vmem:[%s225 + $0x40] sm:$0xff] %v447
        %527 = vst [vmem:[%s225 + $0x48] sm:$0xff] %v450
        %528 = vst [vmem:[%s225 + $0x50] sm:$0xff] %v453
        %529 = vst [vmem:[%s225 + $0x58] sm:$0xff] %v456
        %530 = vst [vmem:[%s225 + $0x60] sm:$0xff] %v459
        %531 = vst [vmem:[%s225 + $0x68] sm:$0xff] %v462
        %532 = vst [vmem:[%s225 + $0x70] sm:$0xff] %v465
        %533 = vst [vmem:[%s225 + $0x78] sm:$0xff] %v468
        %534 = vst [vmem:[%s225 + $0x80] sm:$0xff] %v471
        %535 = vst [vmem:[%s225 + $0x88] sm:$0xff] %v474
        %536 = vst [vmem:[%s225 + $0x90] sm:$0xff] %v477
        %537 = vst [vmem:[%s225 + $0x98] sm:$0xff] %v480
        %538 = vst [vmem:[%s225 + $0xa0] sm:$0xff] %v483
        %539 = vst [vmem:[%s225 + $0xa8] sm:$0xff] %v486
        %540 = vst [vmem:[%s225 + $0xb0] sm:$0xff] %v489
        %541 = vst [vmem:[%s225 + $0xb8] sm:$0xff] %v492
        %542 = vst [vmem:[%s225 + $0xc0] sm:$0xff] %v495
        %543 = vst [vmem:[%s225 + $0xc8] sm:$0xff] %v498
        %544 = vst [vmem:[%s225 + $0xd0] sm:$0xff] %v501
        %545 = vst [vmem:[%s225 + $0xd8] sm:$0xff] %v504
        %546 = vst [vmem:[%s225 + $0xe0] sm:$0xff] %v507
        %547 = vst [vmem:[%s225 + $0xe8] sm:$0xff] %v510
        %548 = vst [vmem:[%s225 + $0xf0] sm:$0xff] %v513
        %549 = vst [vmem:[%s225 + $0xf8] sm:$0xff] %v516
        %s550 = sand.u32 %s113, 1
        %s551 = scalar_lea.sflag [#allocation4], %s550
        %s552 = sand.u32 %s113, 1
        %s553 = smul.addr %s552, 256
        %s554 = scalar_lea.vmem [#allocation7], %s553
        // Predicated region
        $region41: #{tpu_custom_call.1} parent=31 // pred_check
          %p555 = pneg %p123
        $region42: #{tpu_custom_call.1} parent=31 // pred_check_branch
          %557 = sbr.rel (%p555) target = $region44
        $region43: #{tpu_custom_call.1} parent=31 // pred_region
          %s558 = smul.u32 32, %s26
          %560 = vsyncadd %s551, 0
          %s561 = smul.addr %s25, 32
          %s562 = sadd.s32 %s558, %s561
          %s563 = smul.addr %s562, 8
          %s564 = scalar_lea.hbm %s3, %s563
          %s565 = sshll.u32 %s554, 4
          %s566 = int_to_ptr.vmem [resolvable:$true] %s565
          %s567 = sshll.u32 %s564, 4
          %s568 = int_to_ptr.hbm [resolvable:$true] %s567
          %573 = dma.vmem_to_hbm [thread:$0]  %s566, 4096, %s568, %s551, 128, 128, 8
        $region44: #{tpu_custom_call.1} parent=31 // pred_fallthru
          _
      $region32: #{tpu_custom_call.1} parent=5 // pred_fallthru
        _
      %p574 = scmp.le.s32.totalorder 2, %s16
      // Predicated region
      $region45: #{tpu_custom_call.1} parent=5 // pred_check
        %p575 = pneg %p574
      $region46: #{tpu_custom_call.1} parent=5 // pred_check_branch
        %577 = sbr.rel (%p575) target = $region48
      $region47: #{tpu_custom_call.1} parent=5 // pred_region
        %s578 = ssub.s32 %s16, 2
        // Predicated region
        $region49: #{tpu_custom_call.1} parent=47 // pred_check
          %p579 = pneg %p129
        $region50: #{tpu_custom_call.1} parent=47 // pred_check_branch
          %581 = sbr.rel (%p579) target = $region52
        $region51: #{tpu_custom_call.1} parent=47 // pred_region
          %s582 = sand.u32 %s114, 1
          %s583 = scalar_lea.sflag [#allocation4], %s582
          %s584 = sand.u32 %s114, 1
          %s585 = smul.addr %s584, 256
          %s586 = scalar_lea.vmem [#allocation7], %s585
          %588 = dma.done %s583, 4096
        $region52: #{tpu_custom_call.1} parent=47 // pred_fallthru
          _
      $region48: #{tpu_custom_call.1} parent=5 // pred_fallthru
        _
    $region6: #{tpu_custom_call.1} parent=1 // loop_footer
      %s20 = sadd.s32 1, %s16
    $region7: #{tpu_custom_call.1} parent=1 // loop_footer_branch
      %15 = sbr.rel target = $region3
    $region8: #{tpu_custom_call.1} parent=1 // loop_exit
      _
    %589 = vsyncpa [#allocation3], 1
    %s590 = scalar_lea.sflag [#allocation3], 1
    %591 = vsyncpa %s590, 1
    %592 = vsyncpa [#allocation6], 1
    %593 = vsyncpa [#allocation4], 1
    %s594 = scalar_lea.sflag [#allocation4], 1
    %595 = vsyncpa %s594, 1

</llo_original>
